<compile_context>
chip_gen: v5e
topology: v5e:2x2
jax: 0.10.0
libtpu: 0.0.40
codegen_flags: <defaults>
</compile_context>

<pallas_src>
import functools

import jax
import jax.numpy as jnp
import numpy as np
from jax.experimental import pallas as pl
from jax.experimental.pallas import tpu as pltpu

NUM_UNITS = 128  # hidden size H


# ----------------------------------------------------------------------------
# Pallas kernel: one invocation, time loop fully unrolled inside the body.
# Gate order (after wrapper reordering): [i, f, o, g] along the 4H axis.
# ----------------------------------------------------------------------------
def lstm_kernel(x_ref,        # (T*Bp, I)  all timesteps, batch-padded, flattened
                w_ih_ref,     # (I, 4H)    input->gates weights (reordered, transposed)
                w_hh_ref,     # (H, 4H)    hidden->gates weights (reordered, transposed)
                b_ref,        # (1, 4H)    combined bias b_ih + b_hh (reordered)
                w_lin_ref,    # (1, H)     final linear weight
                b_lin_ref,    # (1, 1)     final linear bias
                out_ref,      # (Tp, 1)    output (padded to Tp rows)
                hs_ref,       # (Tp, H)    VMEM scratch: last-batch hidden per step
                *, seq_len, batch_padded, last_row):
    T, Bp = seq_len, batch_padded
    H = w_hh_ref.shape[0]
    I = w_ih_ref.shape[0]

    # Zero the scratch so any padded rows (Tp > T) are deterministic.
    hs_ref[...] = jnp.zeros_like(hs_ref)

    # ---- Prologue: K=2 input projection on the VPU (broadcast FMAs) ----
    # Keeps the almost-empty K=2 contraction off the MXU so W_hh staging can
    # start immediately; entirely off the serial recurrence chain.
    x = x_ref[...]                                        # (T*Bp, I)
    w_ih = w_ih_ref[...]                                  # (I, 4H)
    xg = jnp.broadcast_to(b_ref[...], (T * Bp, 4 * H))    # (T*Bp, 4H)
    for k in range(I):                                    # I == 2, static unroll
        xg = xg + x[:, k:k + 1] * w_ih[k:k + 1, :]

    # W_hh stays resident in bf16: MXU-native operand width, half the weight
    # bytes streamed per step vs. f32 multi-pass.
    w_hh_bf = w_hh_ref[...].astype(jnp.bfloat16)          # (H, 4H)

    def sigmoid(v):
        # One EUP tanh + cheap VPU mul/add instead of exp + reciprocal.
        return 0.5 * jnp.tanh(0.5 * v) + 0.5

    h = jnp.zeros((Bp, H), jnp.float32)
    c = jnp.zeros((Bp, H), jnp.float32)

    # Fully unrolled time loop: T is small and static; only the recurrent
    # h @ W_hh matmul + gate math sits on the serial chain.
    for t in range(T):
        if t == 0:
            # h == 0 at t=0: the recurrent matmul would be all zeros — skip it.
            gates = xg[0:Bp, :]
        else:
            gates = xg[t * Bp:(t + 1) * Bp, :] + jnp.dot(
                h.astype(jnp.bfloat16), w_hh_bf,
                preferred_element_type=jnp.float32)        # (Bp, 4H), f32 acc

        # Gate columns pre-ordered [i, f, o, g]: one sigmoid over (Bp, 3H).
        ifo = sigmoid(gates[:, :3 * H])
        g_g = jnp.tanh(gates[:, 3 * H:])
        i_g = ifo[:, :H]
        f_g = ifo[:, H:2 * H]
        o_g = ifo[:, 2 * H:]

        c = f_g * c + i_g * g_g                            # f32 state
        h = o_g * jnp.tanh(c)

        # Stash the hidden row of the LAST batch element (PyTorch `out[:, -1]`).
        # The vector-store slot is idle on the recurrence chain -> free.
        hs_ref[t:t + 1, :] = h[last_row:last_row + 1, :]   # (1, H)

    # ---- Epilogue: final Linear once for all timesteps ----
    hs = hs_ref[...]                                       # (Tp, H)
    y = (jnp.sum(hs * w_lin_ref[...], axis=-1, keepdims=True)
         + b_lin_ref[...])                                 # (Tp, 1)
    out_ref[...] = y


# ----------------------------------------------------------------------------
# Wrapper
# ----------------------------------------------------------------------------
@jax.jit
def lstm_forward(x, params):
    T, B, I = x.shape
    H = NUM_UNITS
    Bp = ((B + 7) // 8) * 8            # pad batch to a full 8-sublane vreg
    Tp = max(8, ((T + 7) // 8) * 8)    # pad output/scratch rows to a vreg
    last_row = B - 1

    # Reorder PyTorch's [i, f, g, o] gate blocks to [i, f, o, g] so one sigmoid
    # covers a contiguous (B, 3H) slice inside the kernel.
    def reorder(w):                     # blocks of size H along axis 0
        i, f, g, o = jnp.split(w, 4, axis=0)
        return jnp.concatenate([i, f, o, g], axis=0)

    w_ih_t = reorder(params["w_ih"]).T                       # (I, 4H)
    w_hh_t = reorder(params["w_hh"]).T                       # (H, 4H)
    b = reorder(params["b_ih"] + params["b_hh"]).reshape(1, 4 * H)
    w_lin = params["w_lin"].astype(jnp.float32)              # (1, H)
    b_lin = params["b_lin"].reshape(1, 1).astype(jnp.float32)

    # Pad batch with zero rows and flatten time into rows: (T*Bp, I).
    x_p = jnp.pad(x.astype(jnp.float32), ((0, 0), (0, Bp - B), (0, 0)))
    x_flat = x_p.reshape(T * Bp, I)

    kernel = functools.partial(lstm_kernel, seq_len=T,
                               batch_padded=Bp, last_row=last_row)

    vmem = pltpu.MemorySpace.VMEM
    out = pl.pallas_call(
        kernel,
        out_shape=jax.ShapeDtypeStruct((Tp, 1), jnp.float32),
        in_specs=[
            pl.BlockSpec(memory_space=vmem),   # x (all timesteps)
            pl.BlockSpec(memory_space=vmem),   # W_ih^T
            pl.BlockSpec(memory_space=vmem),   # W_hh^T
            pl.BlockSpec(memory_space=vmem),   # bias
            pl.BlockSpec(memory_space=vmem),   # W_lin
            pl.BlockSpec(memory_space=vmem),   # b_lin
        ],
        out_specs=pl.BlockSpec(memory_space=vmem),
        scratch_shapes=[pltpu.VMEM((Tp, H), jnp.float32)],   # per-step h rows
    )(x_flat, w_ih_t, w_hh_t, b, w_lin, b_lin)
    return out[:T, 0]                                         # (T,)


# ----------------------------------------------------------------------------
# Pure-JAX reference (mirrors torch.nn.LSTM + Linear forward exactly)
# ----------------------------------------------------------------------------
def lstm_ref(x, params):
    H = NUM_UNITS
    T, B, _ = x.shape
    w_ih, w_hh = params["w_ih"], params["w_hh"]
    b_ih, b_hh = params["b_ih"], params["b_hh"]

    def step(carry, x_t):
        h, c = carry
        gates = x_t @ w_ih.T + b_ih + h @ w_hh.T + b_hh
        i, f, g, o = jnp.split(gates, 4, axis=-1)
        i, f, o = jax.nn.sigmoid(i), jax.nn.sigmoid(f), jax.nn.sigmoid(o)
        g = jnp.tanh(g)
        c = f * c + i * g
        h = o * jnp.tanh(c)
        return (h, c), h

    init = (jnp.zeros((B, H), jnp.float32), jnp.zeros((B, H), jnp.float32))
    _, hs = jax.lax.scan(step, init, x)                      # (T, B, H)
    y = hs[:, -1, :] @ params["w_lin"].T + params["b_lin"]   # (T, 1)
    return y[:, 0]


# ----------------------------------------------------------------------------
# Deterministic parameter init (PyTorch-style uniform(-1/sqrt(H), 1/sqrt(H)))
# ----------------------------------------------------------------------------
def init_params(key, input_size=2, hidden=NUM_UNITS):
    ks = jax.random.split(key, 6)
    k = 1.0 / np.sqrt(hidden)
    u = lambda kk, shape, bound: jax.random.uniform(
        kk, shape, jnp.float32, minval=-bound, maxval=bound)
    return {
        "w_ih": u(ks[0], (4 * hidden, input_size), k),
        "w_hh": u(ks[1], (4 * hidden, hidden), k),
        "b_ih": u(ks[2], (4 * hidden,), k),
        "b_hh": u(ks[3], (4 * hidden,), k),
        "w_lin": u(ks[4], (1, hidden), 1.0 / np.sqrt(hidden)),
        "b_lin": u(ks[5], (1,), 1.0 / np.sqrt(hidden)),
    }


if __name__ == "__main__":
    key = jax.random.PRNGKey(0)
    k_param, k_x = jax.random.split(key)

    T, B, I = 8, 4, 2                      # seq=8, batch=4, input_size=2
    params = init_params(k_param, input_size=I)
    x = jax.random.normal(k_x, (T, B, I), dtype=jnp.float32)

    out = lstm_forward(x, params)
    out = jax.block_until_ready(out)

    ref = jax.block_until_ready(lstm_ref(x, params))
    np.testing.assert_allclose(np.asarray(out), np.asarray(ref),
                               rtol=2e-2, atol=2e-2)

    print("KERNEL_OK")
</pallas_src>

<mosaic_0001>
module attributes {stable_mosaic.version = 11 : i64} {
  func.func @lstm_kernel(%arg0: memref<64x2xf32, #tpu.memory_space<vmem>>, %arg1: memref<2x512xf32, #tpu.memory_space<vmem>>, %arg2: memref<128x512xf32, #tpu.memory_space<vmem>>, %arg3: memref<1x512xf32, #tpu.memory_space<vmem>>, %arg4: memref<1x128xf32, #tpu.memory_space<vmem>>, %arg5: memref<1x1xf32, #tpu.memory_space<vmem>>, %arg6: memref<8x1xf32, #tpu.memory_space<vmem>>, %arg7: memref<8x128xf32, #tpu.memory_space<vmem>>) attributes {dimension_semantics = [], scalar_prefetch = 0 : i64, scratch_operands = 1 : i64, tpu.core_type = #tpu.core_type<tc>} {
    %cst = arith.constant 0.000000e+00 : f32
    %0 = vector.broadcast %cst : f32 to vector<8x128xf32>
    %c0 = arith.constant 0 : index
    %c0_0 = arith.constant 0 : index
    %1 = vector.load %arg7[%c0, %c0_0] : memref<8x128xf32, #tpu.memory_space<vmem>>, vector<8x128xf32>
    tpu.vector_store %arg7[%c0, %c0_0], %0 {strides = array<i32>} : memref<8x128xf32, #tpu.memory_space<vmem>>, vector<8x128xf32>,
    %c0_1 = arith.constant 0 : index
    %c0_2 = arith.constant 0 : index
    %2 = vector.load %arg0[%c0_1, %c0_2] : memref<64x2xf32, #tpu.memory_space<vmem>>, vector<64x2xf32>
    %c0_3 = arith.constant 0 : index
    %c0_4 = arith.constant 0 : index
    %3 = vector.load %arg1[%c0_3, %c0_4] : memref<2x512xf32, #tpu.memory_space<vmem>>, vector<2x512xf32>
    %c0_5 = arith.constant 0 : index
    %c0_6 = arith.constant 0 : index
    %4 = vector.load %arg3[%c0_5, %c0_6] : memref<1x512xf32, #tpu.memory_space<vmem>>, vector<1x512xf32>
    %5 = vector.shape_cast %4 : vector<1x512xf32> to vector<1x512xf32>
    %6 = vector.broadcast %5 : vector<1x512xf32> to vector<64x512xf32>
    %7 = vector.extract_strided_slice %2 {offsets = [0, 0], sizes = [64, 1], strides = [1, 1]} : vector<64x2xf32> to vector<64x1xf32>
    %8 = vector.extract_strided_slice %3 {offsets = [0, 0], sizes = [1, 512], strides = [1, 1]} : vector<2x512xf32> to vector<1x512xf32>
    %9 = vector.broadcast %7 : vector<64x1xf32> to vector<64x512xf32>
    %10 = vector.broadcast %8 : vector<1x512xf32> to vector<64x512xf32>
    %11 = arith.mulf %9, %10 : vector<64x512xf32>
    %12 = arith.addf %6, %11 : vector<64x512xf32>
    %13 = vector.extract_strided_slice %2 {offsets = [0, 1], sizes = [64, 1], strides = [1, 1]} : vector<64x2xf32> to vector<64x1xf32>
    %14 = vector.extract_strided_slice %3 {offsets = [1, 0], sizes = [1, 512], strides = [1, 1]} : vector<2x512xf32> to vector<1x512xf32>
    %15 = vector.broadcast %13 : vector<64x1xf32> to vector<64x512xf32>
    %16 = vector.broadcast %14 : vector<1x512xf32> to vector<64x512xf32>
    %17 = arith.mulf %15, %16 : vector<64x512xf32>
    %18 = arith.addf %12, %17 : vector<64x512xf32>
    %c0_7 = arith.constant 0 : index
    %c0_8 = arith.constant 0 : index
    %19 = vector.load %arg2[%c0_7, %c0_8] : memref<128x512xf32, #tpu.memory_space<vmem>>, vector<128x512xf32>
    %20 = arith.truncf %19 : vector<128x512xf32> to vector<128x512xbf16>
    %cst_9 = arith.constant 0.000000e+00 : f32
    %21 = vector.broadcast %cst_9 : f32 to vector<8x128xf32>
    %22 = vector.extract_strided_slice %18 {offsets = [0, 0], sizes = [8, 512], strides = [1, 1]} : vector<64x512xf32> to vector<8x512xf32>
    %23 = vector.extract_strided_slice %22 {offsets = [0, 0], sizes = [8, 384], strides = [1, 1]} : vector<8x512xf32> to vector<8x384xf32>
    %cst_10 = arith.constant 5.000000e-01 : f32
    %24 = vector.broadcast %cst_10 : f32 to vector<8x384xf32>
    %25 = arith.mulf %24, %23 : vector<8x384xf32>
    %26 = math.tanh %25 : vector<8x384xf32>
    %cst_11 = arith.constant 5.000000e-01 : f32
    %27 = vector.broadcast %cst_11 : f32 to vector<8x384xf32>
    %28 = arith.mulf %27, %26 : vector<8x384xf32>
    %cst_12 = arith.constant 5.000000e-01 : f32
    %29 = vector.broadcast %cst_12 : f32 to vector<8x384xf32>
    %30 = arith.addf %28, %29 : vector<8x384xf32>
    %31 = vector.extract_strided_slice %22 {offsets = [0, 384], sizes = [8, 128], strides = [1, 1]} : vector<8x512xf32> to vector<8x128xf32>
    %32 = math.tanh %31 : vector<8x128xf32>
    %33 = vector.extract_strided_slice %30 {offsets = [0, 0], sizes = [8, 128], strides = [1, 1]} : vector<8x384xf32> to vector<8x128xf32>
    %34 = vector.extract_strided_slice %30 {offsets = [0, 128], sizes = [8, 128], strides = [1, 1]} : vector<8x384xf32> to vector<8x128xf32>
    %35 = vector.extract_strided_slice %30 {offsets = [0, 256], sizes = [8, 128], strides = [1, 1]} : vector<8x384xf32> to vector<8x128xf32>
    %36 = arith.mulf %34, %21 : vector<8x128xf32>
    %37 = arith.mulf %33, %32 : vector<8x128xf32>
    %38 = arith.addf %36, %37 : vector<8x128xf32>
    %39 = math.tanh %38 : vector<8x128xf32>
    %40 = arith.mulf %35, %39 : vector<8x128xf32>
    %41 = vector.extract_strided_slice %40 {offsets = [3, 0], sizes = [1, 128], strides = [1, 1]} : vector<8x128xf32> to vector<1x128xf32>
    %c0_13 = arith.constant 0 : index
    %c0_14 = arith.constant 0 : index
    %42 = vector.load %arg7[%c0_13, %c0_14] : memref<8x128xf32, #tpu.memory_space<vmem>>, vector<1x128xf32>
    tpu.vector_store %arg7[%c0_13, %c0_14], %41 {strides = array<i32>} : memref<8x128xf32, #tpu.memory_space<vmem>>, vector<1x128xf32>,
    %43 = vector.extract_strided_slice %18 {offsets = [8, 0], sizes = [8, 512], strides = [1, 1]} : vector<64x512xf32> to vector<8x512xf32>
    %44 = arith.truncf %40 : vector<8x128xf32> to vector<8x128xbf16>
    %cst_15 = arith.constant dense<0.000000e+00> : vector<8x512xf32>
    %45 = tpu.matmul %44, %20, %cst_15 {dimension_numbers = #tpu.dot_dimension_numbers<[1], [0], [0], [1], [0, 0, 1, 1], [], []>} : vector<8x128xbf16>, vector<128x512xbf16>, vector<8x512xf32> -> vector<8x512xf32>
    %46 = arith.addf %43, %45 : vector<8x512xf32>
    %47 = vector.extract_strided_slice %46 {offsets = [0, 0], sizes = [8, 384], strides = [1, 1]} : vector<8x512xf32> to vector<8x384xf32>
    %cst_16 = arith.constant 5.000000e-01 : f32
    %48 = vector.broadcast %cst_16 : f32 to vector<8x384xf32>
    %49 = arith.mulf %48, %47 : vector<8x384xf32>
    %50 = math.tanh %49 : vector<8x384xf32>
    %cst_17 = arith.constant 5.000000e-01 : f32
    %51 = vector.broadcast %cst_17 : f32 to vector<8x384xf32>
    %52 = arith.mulf %51, %50 : vector<8x384xf32>
    %cst_18 = arith.constant 5.000000e-01 : f32
    %53 = vector.broadcast %cst_18 : f32 to vector<8x384xf32>
    %54 = arith.addf %52, %53 : vector<8x384xf32>
    %55 = vector.extract_strided_slice %46 {offsets = [0, 384], sizes = [8, 128], strides = [1, 1]} : vector<8x512xf32> to vector<8x128xf32>
    %56 = math.tanh %55 : vector<8x128xf32>
    %57 = vector.extract_strided_slice %54 {offsets = [0, 0], sizes = [8, 128], strides = [1, 1]} : vector<8x384xf32> to vector<8x128xf32>
    %58 = vector.extract_strided_slice %54 {offsets = [0, 128], sizes = [8, 128], strides = [1, 1]} : vector<8x384xf32> to vector<8x128xf32>
    %59 = vector.extract_strided_slice %54 {offsets = [0, 256], sizes = [8, 128], strides = [1, 1]} : vector<8x384xf32> to vector<8x128xf32>
    %60 = arith.mulf %58, %38 : vector<8x128xf32>
    %61 = arith.mulf %57, %56 : vector<8x128xf32>
    %62 = arith.addf %60, %61 : vector<8x128xf32>
    %63 = math.tanh %62 : vector<8x128xf32>
    %64 = arith.mulf %59, %63 : vector<8x128xf32>
    %65 = vector.extract_strided_slice %64 {offsets = [3, 0], sizes = [1, 128], strides = [1, 1]} : vector<8x128xf32> to vector<1x128xf32>
    %c1 = arith.constant 1 : index
    %c0_19 = arith.constant 0 : index
    %66 = vector.load %arg7[%c1, %c0_19] : memref<8x128xf32, #tpu.memory_space<vmem>>, vector<1x128xf32>
    tpu.vector_store %arg7[%c1, %c0_19], %65 {strides = array<i32>} : memref<8x128xf32, #tpu.memory_space<vmem>>, vector<1x128xf32>,
    %67 = vector.extract_strided_slice %18 {offsets = [16, 0], sizes = [8, 512], strides = [1, 1]} : vector<64x512xf32> to vector<8x512xf32>
    %68 = arith.truncf %64 : vector<8x128xf32> to vector<8x128xbf16>
    %cst_20 = arith.constant dense<0.000000e+00> : vector<8x512xf32>
    %69 = tpu.matmul %68, %20, %cst_20 {dimension_numbers = #tpu.dot_dimension_numbers<[1], [0], [0], [1], [0, 0, 1, 1], [], []>} : vector<8x128xbf16>, vector<128x512xbf16>, vector<8x512xf32> -> vector<8x512xf32>
    %70 = arith.addf %67, %69 : vector<8x512xf32>
    %71 = vector.extract_strided_slice %70 {offsets = [0, 0], sizes = [8, 384], strides = [1, 1]} : vector<8x512xf32> to vector<8x384xf32>
    %cst_21 = arith.constant 5.000000e-01 : f32
    %72 = vector.broadcast %cst_21 : f32 to vector<8x384xf32>
    %73 = arith.mulf %72, %71 : vector<8x384xf32>
    %74 = math.tanh %73 : vector<8x384xf32>
    %cst_22 = arith.constant 5.000000e-01 : f32
    %75 = vector.broadcast %cst_22 : f32 to vector<8x384xf32>
    %76 = arith.mulf %75, %74 : vector<8x384xf32>
    %cst_23 = arith.constant 5.000000e-01 : f32
    %77 = vector.broadcast %cst_23 : f32 to vector<8x384xf32>
    %78 = arith.addf %76, %77 : vector<8x384xf32>
    %79 = vector.extract_strided_slice %70 {offsets = [0, 384], sizes = [8, 128], strides = [1, 1]} : vector<8x512xf32> to vector<8x128xf32>
    %80 = math.tanh %79 : vector<8x128xf32>
    %81 = vector.extract_strided_slice %78 {offsets = [0, 0], sizes = [8, 128], strides = [1, 1]} : vector<8x384xf32> to vector<8x128xf32>
    %82 = vector.extract_strided_slice %78 {offsets = [0, 128], sizes = [8, 128], strides = [1, 1]} : vector<8x384xf32> to vector<8x128xf32>
    %83 = vector.extract_strided_slice %78 {offsets = [0, 256], sizes = [8, 128], strides = [1, 1]} : vector<8x384xf32> to vector<8x128xf32>
    %84 = arith.mulf %82, %62 : vector<8x128xf32>
    %85 = arith.mulf %81, %80 : vector<8x128xf32>
    %86 = arith.addf %84, %85 : vector<8x128xf32>
    %87 = math.tanh %86 : vector<8x128xf32>
    %88 = arith.mulf %83, %87 : vector<8x128xf32>
    %89 = vector.extract_strided_slice %88 {offsets = [3, 0], sizes = [1, 128], strides = [1, 1]} : vector<8x128xf32> to vector<1x128xf32>
    %c2 = arith.constant 2 : index
    %c0_24 = arith.constant 0 : index
    %90 = vector.load %arg7[%c2, %c0_24] : memref<8x128xf32, #tpu.memory_space<vmem>>, vector<1x128xf32>
    tpu.vector_store %arg7[%c2, %c0_24], %89 {strides = array<i32>} : memref<8x128xf32, #tpu.memory_space<vmem>>, vector<1x128xf32>,
    %91 = vector.extract_strided_slice %18 {offsets = [24, 0], sizes = [8, 512], strides = [1, 1]} : vector<64x512xf32> to vector<8x512xf32>
    %92 = arith.truncf %88 : vector<8x128xf32> to vector<8x128xbf16>
    %cst_25 = arith.constant dense<0.000000e+00> : vector<8x512xf32>
    %93 = tpu.matmul %92, %20, %cst_25 {dimension_numbers = #tpu.dot_dimension_numbers<[1], [0], [0], [1], [0, 0, 1, 1], [], []>} : vector<8x128xbf16>, vector<128x512xbf16>, vector<8x512xf32> -> vector<8x512xf32>
    %94 = arith.addf %91, %93 : vector<8x512xf32>
    %95 = vector.extract_strided_slice %94 {offsets = [0, 0], sizes = [8, 384], strides = [1, 1]} : vector<8x512xf32> to vector<8x384xf32>
    %cst_26 = arith.constant 5.000000e-01 : f32
    %96 = vector.broadcast %cst_26 : f32 to vector<8x384xf32>
    %97 = arith.mulf %96, %95 : vector<8x384xf32>
    %98 = math.tanh %97 : vector<8x384xf32>
    %cst_27 = arith.constant 5.000000e-01 : f32
    %99 = vector.broadcast %cst_27 : f32 to vector<8x384xf32>
    %100 = arith.mulf %99, %98 : vector<8x384xf32>
    %cst_28 = arith.constant 5.000000e-01 : f32
    %101 = vector.broadcast %cst_28 : f32 to vector<8x384xf32>
    %102 = arith.addf %100, %101 : vector<8x384xf32>
    %103 = vector.extract_strided_slice %94 {offsets = [0, 384], sizes = [8, 128], strides = [1, 1]} : vector<8x512xf32> to vector<8x128xf32>
    %104 = math.tanh %103 : vector<8x128xf32>
    %105 = vector.extract_strided_slice %102 {offsets = [0, 0], sizes = [8, 128], strides = [1, 1]} : vector<8x384xf32> to vector<8x128xf32>
    %106 = vector.extract_strided_slice %102 {offsets = [0, 128], sizes = [8, 128], strides = [1, 1]} : vector<8x384xf32> to vector<8x128xf32>
    %107 = vector.extract_strided_slice %102 {offsets = [0, 256], sizes = [8, 128], strides = [1, 1]} : vector<8x384xf32> to vector<8x128xf32>
    %108 = arith.mulf %106, %86 : vector<8x128xf32>
    %109 = arith.mulf %105, %104 : vector<8x128xf32>
    %110 = arith.addf %108, %109 : vector<8x128xf32>
    %111 = math.tanh %110 : vector<8x128xf32>
    %112 = arith.mulf %107, %111 : vector<8x128xf32>
    %113 = vector.extract_strided_slice %112 {offsets = [3, 0], sizes = [1, 128], strides = [1, 1]} : vector<8x128xf32> to vector<1x128xf32>
    %c3 = arith.constant 3 : index
    %c0_29 = arith.constant 0 : index
    %114 = vector.load %arg7[%c3, %c0_29] : memref<8x128xf32, #tpu.memory_space<vmem>>, vector<1x128xf32>
    tpu.vector_store %arg7[%c3, %c0_29], %113 {strides = array<i32>} : memref<8x128xf32, #tpu.memory_space<vmem>>, vector<1x128xf32>,
    %115 = vector.extract_strided_slice %18 {offsets = [32, 0], sizes = [8, 512], strides = [1, 1]} : vector<64x512xf32> to vector<8x512xf32>
    %116 = arith.truncf %112 : vector<8x128xf32> to vector<8x128xbf16>
    %cst_30 = arith.constant dense<0.000000e+00> : vector<8x512xf32>
    %117 = tpu.matmul %116, %20, %cst_30 {dimension_numbers = #tpu.dot_dimension_numbers<[1], [0], [0], [1], [0, 0, 1, 1], [], []>} : vector<8x128xbf16>, vector<128x512xbf16>, vector<8x512xf32> -> vector<8x512xf32>
    %118 = arith.addf %115, %117 : vector<8x512xf32>
    %119 = vector.extract_strided_slice %118 {offsets = [0, 0], sizes = [8, 384], strides = [1, 1]} : vector<8x512xf32> to vector<8x384xf32>
    %cst_31 = arith.constant 5.000000e-01 : f32
    %120 = vector.broadcast %cst_31 : f32 to vector<8x384xf32>
    %121 = arith.mulf %120, %119 : vector<8x384xf32>
    %122 = math.tanh %121 : vector<8x384xf32>
    %cst_32 = arith.constant 5.000000e-01 : f32
    %123 = vector.broadcast %cst_32 : f32 to vector<8x384xf32>
    %124 = arith.mulf %123, %122 : vector<8x384xf32>
    %cst_33 = arith.constant 5.000000e-01 : f32
    %125 = vector.broadcast %cst_33 : f32 to vector<8x384xf32>
    %126 = arith.addf %124, %125 : vector<8x384xf32>
    %127 = vector.extract_strided_slice %118 {offsets = [0, 384], sizes = [8, 128], strides = [1, 1]} : vector<8x512xf32> to vector<8x128xf32>
    %128 = math.tanh %127 : vector<8x128xf32>
    %129 = vector.extract_strided_slice %126 {offsets = [0, 0], sizes = [8, 128], strides = [1, 1]} : vector<8x384xf32> to vector<8x128xf32>
    %130 = vector.extract_strided_slice %126 {offsets = [0, 128], sizes = [8, 128], strides = [1, 1]} : vector<8x384xf32> to vector<8x128xf32>
    %131 = vector.extract_strided_slice %126 {offsets = [0, 256], sizes = [8, 128], strides = [1, 1]} : vector<8x384xf32> to vector<8x128xf32>
    %132 = arith.mulf %130, %110 : vector<8x128xf32>
    %133 = arith.mulf %129, %128 : vector<8x128xf32>
    %134 = arith.addf %132, %133 : vector<8x128xf32>
    %135 = math.tanh %134 : vector<8x128xf32>
    %136 = arith.mulf %131, %135 : vector<8x128xf32>
    %137 = vector.extract_strided_slice %136 {offsets = [3, 0], sizes = [1, 128], strides = [1, 1]} : vector<8x128xf32> to vector<1x128xf32>
    %c4 = arith.constant 4 : index
    %c0_34 = arith.constant 0 : index
    %138 = vector.load %arg7[%c4, %c0_34] : memref<8x128xf32, #tpu.memory_space<vmem>>, vector<1x128xf32>
    tpu.vector_store %arg7[%c4, %c0_34], %137 {strides = array<i32>} : memref<8x128xf32, #tpu.memory_space<vmem>>, vector<1x128xf32>,
    %139 = vector.extract_strided_slice %18 {offsets = [40, 0], sizes = [8, 512], strides = [1, 1]} : vector<64x512xf32> to vector<8x512xf32>
    %140 = arith.truncf %136 : vector<8x128xf32> to vector<8x128xbf16>
    %cst_35 = arith.constant dense<0.000000e+00> : vector<8x512xf32>
    %141 = tpu.matmul %140, %20, %cst_35 {dimension_numbers = #tpu.dot_dimension_numbers<[1], [0], [0], [1], [0, 0, 1, 1], [], []>} : vector<8x128xbf16>, vector<128x512xbf16>, vector<8x512xf32> -> vector<8x512xf32>
    %142 = arith.addf %139, %141 : vector<8x512xf32>
    %143 = vector.extract_strided_slice %142 {offsets = [0, 0], sizes = [8, 384], strides = [1, 1]} : vector<8x512xf32> to vector<8x384xf32>
    %cst_36 = arith.constant 5.000000e-01 : f32
    %144 = vector.broadcast %cst_36 : f32 to vector<8x384xf32>
    %145 = arith.mulf %144, %143 : vector<8x384xf32>
    %146 = math.tanh %145 : vector<8x384xf32>
    %cst_37 = arith.constant 5.000000e-01 : f32
    %147 = vector.broadcast %cst_37 : f32 to vector<8x384xf32>
    %148 = arith.mulf %147, %146 : vector<8x384xf32>
    %cst_38 = arith.constant 5.000000e-01 : f32
    %149 = vector.broadcast %cst_38 : f32 to vector<8x384xf32>
    %150 = arith.addf %148, %149 : vector<8x384xf32>
    %151 = vector.extract_strided_slice %142 {offsets = [0, 384], sizes = [8, 128], strides = [1, 1]} : vector<8x512xf32> to vector<8x128xf32>
    %152 = math.tanh %151 : vector<8x128xf32>
    %153 = vector.extract_strided_slice %150 {offsets = [0, 0], sizes = [8, 128], strides = [1, 1]} : vector<8x384xf32> to vector<8x128xf32>
    %154 = vector.extract_strided_slice %150 {offsets = [0, 128], sizes = [8, 128], strides = [1, 1]} : vector<8x384xf32> to vector<8x128xf32>
    %155 = vector.extract_strided_slice %150 {offsets = [0, 256], sizes = [8, 128], strides = [1, 1]} : vector<8x384xf32> to vector<8x128xf32>
    %156 = arith.mulf %154, %134 : vector<8x128xf32>
    %157 = arith.mulf %153, %152 : vector<8x128xf32>
    %158 = arith.addf %156, %157 : vector<8x128xf32>
    %159 = math.tanh %158 : vector<8x128xf32>
    %160 = arith.mulf %155, %159 : vector<8x128xf32>
    %161 = vector.extract_strided_slice %160 {offsets = [3, 0], sizes = [1, 128], strides = [1, 1]} : vector<8x128xf32> to vector<1x128xf32>
    %c5 = arith.constant 5 : index
    %c0_39 = arith.constant 0 : index
    %162 = vector.load %arg7[%c5, %c0_39] : memref<8x128xf32, #tpu.memory_space<vmem>>, vector<1x128xf32>
    tpu.vector_store %arg7[%c5, %c0_39], %161 {strides = array<i32>} : memref<8x128xf32, #tpu.memory_space<vmem>>, vector<1x128xf32>,
    %163 = vector.extract_strided_slice %18 {offsets = [48, 0], sizes = [8, 512], strides = [1, 1]} : vector<64x512xf32> to vector<8x512xf32>
    %164 = arith.truncf %160 : vector<8x128xf32> to vector<8x128xbf16>
    %cst_40 = arith.constant dense<0.000000e+00> : vector<8x512xf32>
    %165 = tpu.matmul %164, %20, %cst_40 {dimension_numbers = #tpu.dot_dimension_numbers<[1], [0], [0], [1], [0, 0, 1, 1], [], []>} : vector<8x128xbf16>, vector<128x512xbf16>, vector<8x512xf32> -> vector<8x512xf32>
    %166 = arith.addf %163, %165 : vector<8x512xf32>
    %167 = vector.extract_strided_slice %166 {offsets = [0, 0], sizes = [8, 384], strides = [1, 1]} : vector<8x512xf32> to vector<8x384xf32>
    %cst_41 = arith.constant 5.000000e-01 : f32
    %168 = vector.broadcast %cst_41 : f32 to vector<8x384xf32>
    %169 = arith.mulf %168, %167 : vector<8x384xf32>
    %170 = math.tanh %169 : vector<8x384xf32>
    %cst_42 = arith.constant 5.000000e-01 : f32
    %171 = vector.broadcast %cst_42 : f32 to vector<8x384xf32>
    %172 = arith.mulf %171, %170 : vector<8x384xf32>
    %cst_43 = arith.constant 5.000000e-01 : f32
    %173 = vector.broadcast %cst_43 : f32 to vector<8x384xf32>
    %174 = arith.addf %172, %173 : vector<8x384xf32>
    %175 = vector.extract_strided_slice %166 {offsets = [0, 384], sizes = [8, 128], strides = [1, 1]} : vector<8x512xf32> to vector<8x128xf32>
    %176 = math.tanh %175 : vector<8x128xf32>
    %177 = vector.extract_strided_slice %174 {offsets = [0, 0], sizes = [8, 128], strides = [1, 1]} : vector<8x384xf32> to vector<8x128xf32>
    %178 = vector.extract_strided_slice %174 {offsets = [0, 128], sizes = [8, 128], strides = [1, 1]} : vector<8x384xf32> to vector<8x128xf32>
    %179 = vector.extract_strided_slice %174 {offsets = [0, 256], sizes = [8, 128], strides = [1, 1]} : vector<8x384xf32> to vector<8x128xf32>
    %180 = arith.mulf %178, %158 : vector<8x128xf32>
    %181 = arith.mulf %177, %176 : vector<8x128xf32>
    %182 = arith.addf %180, %181 : vector<8x128xf32>
    %183 = math.tanh %182 : vector<8x128xf32>
    %184 = arith.mulf %179, %183 : vector<8x128xf32>
    %185 = vector.extract_strided_slice %184 {offsets = [3, 0], sizes = [1, 128], strides = [1, 1]} : vector<8x128xf32> to vector<1x128xf32>
    %c6 = arith.constant 6 : index
    %c0_44 = arith.constant 0 : index
    %186 = vector.load %arg7[%c6, %c0_44] : memref<8x128xf32, #tpu.memory_space<vmem>>, vector<1x128xf32>
    tpu.vector_store %arg7[%c6, %c0_44], %185 {strides = array<i32>} : memref<8x128xf32, #tpu.memory_space<vmem>>, vector<1x128xf32>,
    %187 = vector.extract_strided_slice %18 {offsets = [56, 0], sizes = [8, 512], strides = [1, 1]} : vector<64x512xf32> to vector<8x512xf32>
    %188 = arith.truncf %184 : vector<8x128xf32> to vector<8x128xbf16>
    %cst_45 = arith.constant dense<0.000000e+00> : vector<8x512xf32>
    %189 = tpu.matmul %188, %20, %cst_45 {dimension_numbers = #tpu.dot_dimension_numbers<[1], [0], [0], [1], [0, 0, 1, 1], [], []>} : vector<8x128xbf16>, vector<128x512xbf16>, vector<8x512xf32> -> vector<8x512xf32>
    %190 = arith.addf %187, %189 : vector<8x512xf32>
    %191 = vector.extract_strided_slice %190 {offsets = [0, 0], sizes = [8, 384], strides = [1, 1]} : vector<8x512xf32> to vector<8x384xf32>
    %cst_46 = arith.constant 5.000000e-01 : f32
    %192 = vector.broadcast %cst_46 : f32 to vector<8x384xf32>
    %193 = arith.mulf %192, %191 : vector<8x384xf32>
    %194 = math.tanh %193 : vector<8x384xf32>
    %cst_47 = arith.constant 5.000000e-01 : f32
    %195 = vector.broadcast %cst_47 : f32 to vector<8x384xf32>
    %196 = arith.mulf %195, %194 : vector<8x384xf32>
    %cst_48 = arith.constant 5.000000e-01 : f32
    %197 = vector.broadcast %cst_48 : f32 to vector<8x384xf32>
    %198 = arith.addf %196, %197 : vector<8x384xf32>
    %199 = vector.extract_strided_slice %190 {offsets = [0, 384], sizes = [8, 128], strides = [1, 1]} : vector<8x512xf32> to vector<8x128xf32>
    %200 = math.tanh %199 : vector<8x128xf32>
    %201 = vector.extract_strided_slice %198 {offsets = [0, 0], sizes = [8, 128], strides = [1, 1]} : vector<8x384xf32> to vector<8x128xf32>
    %202 = vector.extract_strided_slice %198 {offsets = [0, 128], sizes = [8, 128], strides = [1, 1]} : vector<8x384xf32> to vector<8x128xf32>
    %203 = vector.extract_strided_slice %198 {offsets = [0, 256], sizes = [8, 128], strides = [1, 1]} : vector<8x384xf32> to vector<8x128xf32>
    %204 = arith.mulf %202, %182 : vector<8x128xf32>
    %205 = arith.mulf %201, %200 : vector<8x128xf32>
    %206 = arith.addf %204, %205 : vector<8x128xf32>
    %207 = math.tanh %206 : vector<8x128xf32>
    %208 = arith.mulf %203, %207 : vector<8x128xf32>
    %209 = vector.extract_strided_slice %208 {offsets = [3, 0], sizes = [1, 128], strides = [1, 1]} : vector<8x128xf32> to vector<1x128xf32>
    %c7 = arith.constant 7 : index
    %c0_49 = arith.constant 0 : index
    %210 = vector.load %arg7[%c7, %c0_49] : memref<8x128xf32, #tpu.memory_space<vmem>>, vector<1x128xf32>
    tpu.vector_store %arg7[%c7, %c0_49], %209 {strides = array<i32>} : memref<8x128xf32, #tpu.memory_space<vmem>>, vector<1x128xf32>,
    %c0_50 = arith.constant 0 : index
    %c0_51 = arith.constant 0 : index
    %211 = vector.load %arg7[%c0_50, %c0_51] : memref<8x128xf32, #tpu.memory_space<vmem>>, vector<8x128xf32>
    %c0_52 = arith.constant 0 : index
    %c0_53 = arith.constant 0 : index
    %212 = vector.load %arg4[%c0_52, %c0_53] : memref<1x128xf32, #tpu.memory_space<vmem>>, vector<1x128xf32>
    %213 = vector.broadcast %212 : vector<1x128xf32> to vector<8x128xf32>
    %214 = arith.mulf %211, %213 : vector<8x128xf32>
    %cst_54 = arith.constant dense<0.000000e+00> : vector<8xf32>
    %215 = vector.multi_reduction <add>, %214, %cst_54 [1] : vector<8x128xf32> to vector<8xf32>
    %216 = vector.shape_cast %215 : vector<8xf32> to vector<8x1xf32>
    %c0_55 = arith.constant 0 : index
    %c0_56 = arith.constant 0 : index
    %217 = vector.load %arg5[%c0_55, %c0_56] : memref<1x1xf32, #tpu.memory_space<vmem>>, vector<1x1xf32>
    %218 = vector.broadcast %217 : vector<1x1xf32> to vector<8x1xf32>
    %219 = arith.addf %216, %218 : vector<8x1xf32>
    %c0_57 = arith.constant 0 : index
    %c0_58 = arith.constant 0 : index
    %220 = vector.load %arg6[%c0_57, %c0_58] : memref<8x1xf32, #tpu.memory_space<vmem>>, vector<8x1xf32>
    tpu.vector_store %arg6[%c0_57, %c0_58], %219 {strides = array<i32>} : memref<8x1xf32, #tpu.memory_space<vmem>>, vector<8x1xf32>,
    return
  }
}

</mosaic_0001>

<llo_original>
// kernel: lstm_forward.1
$region0: #{lstm_forward.1}
  #allocation0 [shape = 'u32[]', space=smem, size = 0x4, offset = 0x4, fixed_abs, tag = 'smem constant byte address 0x4 - core index']
  #allocation1 [shape = 'u32[72,128]{1,0:T(1,128)}', space=vmem, size = 0x9000, scoped, tag = 'internal scratch']
  #allocation2 [shape = 'f32[8,128]{1,0:T(8,128)}', space=vmem, size = 0x1000, scoped, tag = 'scratch operand']
  #allocation3 [shape = 'f32[1,1]{1,0:T(1,128)S(1)}', space=vmem, size = 0x200, scoped, tag = 'scoped memory for lstm_forward.1']
  %s0 = inlined_call_operand.vmem [shape: f32[64,2], index: 0, kind: input, shape index: {}]
  %s1 = inlined_call_operand.vmem [shape: f32[2,512], index: 1, kind: input, shape index: {}]
  %s2 = inlined_call_operand.vmem [shape: f32[128,512], index: 2, kind: input, shape index: {}]
  %s3 = inlined_call_operand.vmem [shape: f32[1,512], index: 3, kind: input, shape index: {}]
  %s4 = inlined_call_operand.vmem [shape: f32[1,128], index: 4, kind: input, shape index: {}]
  %s5 = inlined_call_operand.<no memory space> [shape: f32[1,1], index: 5, kind: input, shape index: {}]
  %s6 = inlined_call_operand.vmem [shape: f32[8,1], index: 6, kind: output, shape index: {}]
  %s7 = sld [smem:[#allocation0]]
  $region34: #{lstm_forward.1} parent=0
    _
  %s9 = ssub.s32 1, %s7
  %s10 = scalar_select 0, %s9, %s7
  %v11 = vstv %s5
  %12 = vst [vmem:[#allocation3] sm:$0x1] %v11
  // Predicated region
  $region2: #{lstm_forward.1} parent=0 // pred_check
    _
  $region3: #{lstm_forward.1} parent=0 // pred_check_branch
    %14 = sbr.rel (0) target = $region5
  $region4: #{lstm_forward.1} parent=0 // pred_region
    _
  $region5: #{lstm_forward.1} parent=0 // pred_fallthru
    _
  // Predicated region
  $region6: #{lstm_forward.1} parent=0 // pred_check
    _
  $region7: #{lstm_forward.1} parent=0 // pred_check_branch
    %16 = sbr.rel (0) target = $region9
  $region8: #{lstm_forward.1} parent=0 // pred_region
    _
  $region9: #{lstm_forward.1} parent=0 // pred_fallthru
    _
  // Predicated region
  $region10: #{lstm_forward.1} parent=0 // pred_check
    _
  $region11: #{lstm_forward.1} parent=0 // pred_check_branch
    %18 = sbr.rel (0) target = $region13
  $region12: #{lstm_forward.1} parent=0 // pred_region
    _
  $region13: #{lstm_forward.1} parent=0 // pred_fallthru
    _
  // Predicated region
  $region14: #{lstm_forward.1} parent=0 // pred_check
    _
  $region15: #{lstm_forward.1} parent=0 // pred_check_branch
    %20 = sbr.rel (0) target = $region17
  $region16: #{lstm_forward.1} parent=0 // pred_region
    _
  $region17: #{lstm_forward.1} parent=0 // pred_fallthru
    _
  // Predicated region
  $region18: #{lstm_forward.1} parent=0 // pred_check
    _
  $region19: #{lstm_forward.1} parent=0 // pred_check_branch
    %22 = sbr.rel (0) target = $region21
  $region20: #{lstm_forward.1} parent=0 // pred_region
    _
  $region21: #{lstm_forward.1} parent=0 // pred_fallthru
    _
  // Predicated region
  $region22: #{lstm_forward.1} parent=0 // pred_check
    _
  $region23: #{lstm_forward.1} parent=0 // pred_check_branch
    %24 = sbr.rel (0) target = $region25
  $region24: #{lstm_forward.1} parent=0 // pred_region
    _
  $region25: #{lstm_forward.1} parent=0 // pred_fallthru
    _
  %25 = vst [vmem:[#allocation2] sm:$0xff] 0.0
  %v26 = vld [vmem:[%s0] sm:$0xff]
  %v27 = vld [vmem:[%s0 + $0x8] sm:$0xff]
  %v28 = vld [vmem:[%s0 + $0x10] sm:$0xff]
  %v29 = vld [vmem:[%s0 + $0x18] sm:$0xff]
  %v30 = vld [vmem:[%s0 + $0x20] sm:$0xff]
  %v31 = vld [vmem:[%s0 + $0x28] sm:$0xff]
  %v32 = vld [vmem:[%s0 + $0x30] sm:$0xff]
  %v33 = vld [vmem:[%s0 + $0x38] sm:$0xff]
  %v34 = vld [vmem:[%s1] sm:$0xff]
  %v35 = vld [vmem:[%s3] sm:$0xf]
  %v37 = vperm.slane %v35, 0
  %v38 = vperm.slane %v35, 1
  %v39 = vperm.slane %v35, 2
  %v40 = vperm.slane %v35, 3
  %46 = vset.pattern.permute.xlu0 0
  %47 = vperm.xlu0 %46, %v26
  %v48 = vpop.permute.xlu0 %47
  %51 = vset.pattern.permute.xlu0 0
  %52 = vperm.xlu0 %51, %v27
  %v53 = vpop.permute.xlu0 %52
  %56 = vset.pattern.permute.xlu0 0
  %57 = vperm.xlu0 %56, %v28
  %v58 = vpop.permute.xlu0 %57
  %61 = vset.pattern.permute.xlu0 0
  %62 = vperm.xlu0 %61, %v29
  %v63 = vpop.permute.xlu0 %62
  %66 = vset.pattern.permute.xlu0 0
  %67 = vperm.xlu0 %66, %v30
  %v68 = vpop.permute.xlu0 %67
  %71 = vset.pattern.permute.xlu0 0
  %72 = vperm.xlu0 %71, %v31
  %v73 = vpop.permute.xlu0 %72
  %76 = vset.pattern.permute.xlu0 0
  %77 = vperm.xlu0 %76, %v32
  %v78 = vpop.permute.xlu0 %77
  %81 = vset.pattern.permute.xlu0 0
  %82 = vperm.xlu0 %81, %v33
  %v83 = vpop.permute.xlu0 %82
  %v86 = vperm.slane %v34, 0
  %v87 = vperm.slane %v34, 2
  %v88 = vperm.slane %v34, 4
  %v89 = vperm.slane %v34, 6
  %v94 = vperm.slane %v86, 0
  %v95 = vperm.slane %v87, 0
  %v96 = vperm.slane %v88, 0
  %v97 = vperm.slane %v89, 0
  %v98 = vmul.f32 %v48, %v94
  %v99 = vmul.f32 %v48, %v95
  %v100 = vmul.f32 %v48, %v96
  %v101 = vmul.f32 %v48, %v97
  %v102 = vmul.f32 %v53, %v94
  %v103 = vmul.f32 %v53, %v95
  %v104 = vmul.f32 %v53, %v96
  %v105 = vmul.f32 %v53, %v97
  %v106 = vmul.f32 %v58, %v94
  %v107 = vmul.f32 %v58, %v95
  %v108 = vmul.f32 %v58, %v96
  %v109 = vmul.f32 %v58, %v97
  %v110 = vmul.f32 %v63, %v94
  %v111 = vmul.f32 %v63, %v95
  %v112 = vmul.f32 %v63, %v96
  %v113 = vmul.f32 %v63, %v97
  %v114 = vmul.f32 %v68, %v94
  %v115 = vmul.f32 %v68, %v95
  %v116 = vmul.f32 %v68, %v96
  %v117 = vmul.f32 %v68, %v97
  %v118 = vmul.f32 %v73, %v94
  %v119 = vmul.f32 %v73, %v95
  %v120 = vmul.f32 %v73, %v96
  %v121 = vmul.f32 %v73, %v97
  %v122 = vmul.f32 %v78, %v94
  %v123 = vmul.f32 %v78, %v95
  %v124 = vmul.f32 %v78, %v96
  %v125 = vmul.f32 %v78, %v97
  %v126 = vmul.f32 %v83, %v94
  %v127 = vmul.f32 %v83, %v95
  %v128 = vmul.f32 %v83, %v96
  %v129 = vmul.f32 %v83, %v97
  %v130 = vadd.f32 %v37, %v98
  %v131 = vadd.f32 %v38, %v99
  %v132 = vadd.f32 %v39, %v100
  %v133 = vadd.f32 %v40, %v101
  %v134 = vadd.f32 %v37, %v102
  %v135 = vadd.f32 %v38, %v103
  %v136 = vadd.f32 %v39, %v104
  %v137 = vadd.f32 %v40, %v105
  %v138 = vadd.f32 %v37, %v106
  %v139 = vadd.f32 %v38, %v107
  %v140 = vadd.f32 %v39, %v108
  %v141 = vadd.f32 %v40, %v109
  %v142 = vadd.f32 %v37, %v110
  %v143 = vadd.f32 %v38, %v111
  %v144 = vadd.f32 %v39, %v112
  %v145 = vadd.f32 %v40, %v113
  %v146 = vadd.f32 %v37, %v114
  %v147 = vadd.f32 %v38, %v115
  %v148 = vadd.f32 %v39, %v116
  %v149 = vadd.f32 %v40, %v117
  %v150 = vadd.f32 %v37, %v118
  %v151 = vadd.f32 %v38, %v119
  %v152 = vadd.f32 %v39, %v120
  %v153 = vadd.f32 %v40, %v121
  %v154 = vadd.f32 %v37, %v122
  %v155 = vadd.f32 %v38, %v123
  %v156 = vadd.f32 %v39, %v124
  %v157 = vadd.f32 %v40, %v125
  %v158 = vadd.f32 %v37, %v126
  %v159 = vadd.f32 %v38, %v127
  %v160 = vadd.f32 %v39, %v128
  %v161 = vadd.f32 %v40, %v129
  %162 = vset.pattern.permute.xlu0 1
  %163 = vperm.xlu0 %162, %v26
  %v164 = vpop.permute.xlu0 %163
  %166 = vset.pattern.permute.xlu0 1
  %167 = vperm.xlu0 %166, %v27
  %v168 = vpop.permute.xlu0 %167
  %170 = vset.pattern.permute.xlu0 1
  %171 = vperm.xlu0 %170, %v28
  %v172 = vpop.permute.xlu0 %171
  %174 = vset.pattern.permute.xlu0 1
  %175 = vperm.xlu0 %174, %v29
  %v176 = vpop.permute.xlu0 %175
  %178 = vset.pattern.permute.xlu0 1
  %179 = vperm.xlu0 %178, %v30
  %v180 = vpop.permute.xlu0 %179
  %182 = vset.pattern.permute.xlu0 1
  %183 = vperm.xlu0 %182, %v31
  %v184 = vpop.permute.xlu0 %183
  %186 = vset.pattern.permute.xlu0 1
  %187 = vperm.xlu0 %186, %v32
  %v188 = vpop.permute.xlu0 %187
  %190 = vset.pattern.permute.xlu0 1
  %191 = vperm.xlu0 %190, %v33
  %v192 = vpop.permute.xlu0 %191
  %v194 = vperm.slane %v34, 1
  %v195 = vperm.slane %v34, 3
  %v196 = vperm.slane %v34, 5
  %v197 = vperm.slane %v34, 7
  %v202 = vperm.slane %v194, 1
  %v203 = vperm.slane %v195, 1
  %v204 = vperm.slane %v196, 1
  %v205 = vperm.slane %v197, 1
  %v206 = vmul.f32 %v164, %v202
  %v207 = vmul.f32 %v164, %v203
  %v208 = vmul.f32 %v164, %v204
  %v209 = vmul.f32 %v164, %v205
  %v210 = vmul.f32 %v168, %v202
  %v211 = vmul.f32 %v168, %v203
  %v212 = vmul.f32 %v168, %v204
  %v213 = vmul.f32 %v168, %v205
  %v214 = vmul.f32 %v172, %v202
  %v215 = vmul.f32 %v172, %v203
  %v216 = vmul.f32 %v172, %v204
  %v217 = vmul.f32 %v172, %v205
  %v218 = vmul.f32 %v176, %v202
  %v219 = vmul.f32 %v176, %v203
  %v220 = vmul.f32 %v176, %v204
  %v221 = vmul.f32 %v176, %v205
  %v222 = vmul.f32 %v180, %v202
  %v223 = vmul.f32 %v180, %v203
  %v224 = vmul.f32 %v180, %v204
  %v225 = vmul.f32 %v180, %v205
  %v226 = vmul.f32 %v184, %v202
  %v227 = vmul.f32 %v184, %v203
  %v228 = vmul.f32 %v184, %v204
  %v229 = vmul.f32 %v184, %v205
  %v230 = vmul.f32 %v188, %v202
  %v231 = vmul.f32 %v188, %v203
  %v232 = vmul.f32 %v188, %v204
  %v233 = vmul.f32 %v188, %v205
  %v234 = vmul.f32 %v192, %v202
  %v235 = vmul.f32 %v192, %v203
  %v236 = vmul.f32 %v192, %v204
  %v237 = vmul.f32 %v192, %v205
  %v238 = vadd.f32 %v130, %v206
  %v239 = vadd.f32 %v131, %v207
  %v240 = vadd.f32 %v132, %v208
  %v241 = vadd.f32 %v133, %v209
  %v242 = vadd.f32 %v134, %v210
  %v243 = vadd.f32 %v135, %v211
  %v244 = vadd.f32 %v136, %v212
  %v245 = vadd.f32 %v137, %v213
  %v246 = vadd.f32 %v138, %v214
  %v247 = vadd.f32 %v139, %v215
  %v248 = vadd.f32 %v140, %v216
  %v249 = vadd.f32 %v141, %v217
  %v250 = vadd.f32 %v142, %v218
  %v251 = vadd.f32 %v143, %v219
  %v252 = vadd.f32 %v144, %v220
  %v253 = vadd.f32 %v145, %v221
  %v254 = vadd.f32 %v146, %v222
  %v255 = vadd.f32 %v147, %v223
  %v256 = vadd.f32 %v148, %v224
  %v257 = vadd.f32 %v149, %v225
  %v258 = vadd.f32 %v150, %v226
  %v259 = vadd.f32 %v151, %v227
  %v260 = vadd.f32 %v152, %v228
  %v261 = vadd.f32 %v153, %v229
  %v262 = vadd.f32 %v154, %v230
  %v263 = vadd.f32 %v155, %v231
  %v264 = vadd.f32 %v156, %v232
  %v265 = vadd.f32 %v157, %v233
  %v266 = vadd.f32 %v158, %v234
  %v267 = vadd.f32 %v159, %v235
  %v268 = vadd.f32 %v160, %v236
  %v269 = vadd.f32 %v161, %v237
  %v270 = vld [vmem:[%s2] sm:$0xff]
  %v271 = vld [vmem:[%s2 + $0x8] sm:$0xff]
  %v272 = vld [vmem:[%s2 + $0x10] sm:$0xff]
  %v273 = vld [vmem:[%s2 + $0x18] sm:$0xff]
  %v274 = vld [vmem:[%s2 + $0x20] sm:$0xff]
  %v275 = vld [vmem:[%s2 + $0x28] sm:$0xff]
  %v276 = vld [vmem:[%s2 + $0x30] sm:$0xff]
  %v277 = vld [vmem:[%s2 + $0x38] sm:$0xff]
  %v278 = vld [vmem:[%s2 + $0x40] sm:$0xff]
  %v279 = vld [vmem:[%s2 + $0x48] sm:$0xff]
  %v280 = vld [vmem:[%s2 + $0x50] sm:$0xff]
  %v281 = vld [vmem:[%s2 + $0x58] sm:$0xff]
  %v282 = vld [vmem:[%s2 + $0x60] sm:$0xff]
  %v283 = vld [vmem:[%s2 + $0x68] sm:$0xff]
  %v284 = vld [vmem:[%s2 + $0x70] sm:$0xff]
  %v285 = vld [vmem:[%s2 + $0x78] sm:$0xff]
  %v286 = vld [vmem:[%s2 + $0x80] sm:$0xff]
  %v287 = vld [vmem:[%s2 + $0x88] sm:$0xff]
  %v288 = vld [vmem:[%s2 + $0x90] sm:$0xff]
  %v289 = vld [vmem:[%s2 + $0x98] sm:$0xff]
  %v290 = vld [vmem:[%s2 + $0xa0] sm:$0xff]
  %v291 = vld [vmem:[%s2 + $0xa8] sm:$0xff]
  %v292 = vld [vmem:[%s2 + $0xb0] sm:$0xff]
  %v293 = vld [vmem:[%s2 + $0xb8] sm:$0xff]
  %v294 = vld [vmem:[%s2 + $0xc0] sm:$0xff]
  %v295 = vld [vmem:[%s2 + $0xc8] sm:$0xff]
  %v296 = vld [vmem:[%s2 + $0xd0] sm:$0xff]
  %v297 = vld [vmem:[%s2 + $0xd8] sm:$0xff]
  %v298 = vld [vmem:[%s2 + $0xe0] sm:$0xff]
  %v299 = vld [vmem:[%s2 + $0xe8] sm:$0xff]
  %v300 = vld [vmem:[%s2 + $0xf0] sm:$0xff]
  %v301 = vld [vmem:[%s2 + $0xf8] sm:$0xff]
  %v302 = vld [vmem:[%s2 + $0x100] sm:$0xff]
  %v303 = vld [vmem:[%s2 + $0x108] sm:$0xff]
  %v304 = vld [vmem:[%s2 + $0x110] sm:$0xff]
  %v305 = vld [vmem:[%s2 + $0x118] sm:$0xff]
  %v306 = vld [vmem:[%s2 + $0x120] sm:$0xff]
  %v307 = vld [vmem:[%s2 + $0x128] sm:$0xff]
  %v308 = vld [vmem:[%s2 + $0x130] sm:$0xff]
  %v309 = vld [vmem:[%s2 + $0x138] sm:$0xff]
  %v310 = vld [vmem:[%s2 + $0x140] sm:$0xff]
  %v311 = vld [vmem:[%s2 + $0x148] sm:$0xff]
  %v312 = vld [vmem:[%s2 + $0x150] sm:$0xff]
  %v313 = vld [vmem:[%s2 + $0x158] sm:$0xff]
  %v314 = vld [vmem:[%s2 + $0x160] sm:$0xff]
  %v315 = vld [vmem:[%s2 + $0x168] sm:$0xff]
  %v316 = vld [vmem:[%s2 + $0x170] sm:$0xff]
  %v317 = vld [vmem:[%s2 + $0x178] sm:$0xff]
  %v318 = vld [vmem:[%s2 + $0x180] sm:$0xff]
  %v319 = vld [vmem:[%s2 + $0x188] sm:$0xff]
  %v320 = vld [vmem:[%s2 + $0x190] sm:$0xff]
  %v321 = vld [vmem:[%s2 + $0x198] sm:$0xff]
  %v322 = vld [vmem:[%s2 + $0x1a0] sm:$0xff]
  %v323 = vld [vmem:[%s2 + $0x1a8] sm:$0xff]
  %v324 = vld [vmem:[%s2 + $0x1b0] sm:$0xff]
  %v325 = vld [vmem:[%s2 + $0x1b8] sm:$0xff]
  %v326 = vld [vmem:[%s2 + $0x1c0] sm:$0xff]
  %v327 = vld [vmem:[%s2 + $0x1c8] sm:$0xff]
  %v328 = vld [vmem:[%s2 + $0x1d0] sm:$0xff]
  %v329 = vld [vmem:[%s2 + $0x1d8] sm:$0xff]
  %v330 = vld [vmem:[%s2 + $0x1e0] sm:$0xff]
  %v331 = vld [vmem:[%s2 + $0x1e8] sm:$0xff]
  %v332 = vld [vmem:[%s2 + $0x1f0] sm:$0xff]
  %v333 = vld [vmem:[%s2 + $0x1f8] sm:$0xff]
  %v334 = vpack.c.bf16 %v274, %v270
  %v335 = vpack.c.bf16 %v275, %v271
  %v336 = vpack.c.bf16 %v276, %v272
  %v337 = vpack.c.bf16 %v277, %v273
  %v338 = vpack.c.bf16 %v282, %v278
  %v339 = vpack.c.bf16 %v283, %v279
  %v340 = vpack.c.bf16 %v284, %v280
  %v341 = vpack.c.bf16 %v285, %v281
  %v342 = vpack.c.bf16 %v290, %v286
  %v343 = vpack.c.bf16 %v291, %v287
  %v344 = vpack.c.bf16 %v292, %v288
  %v345 = vpack.c.bf16 %v293, %v289
  %v346 = vpack.c.bf16 %v298, %v294
  %v347 = vpack.c.bf16 %v299, %v295
  %v348 = vpack.c.bf16 %v300, %v296
  %v349 = vpack.c.bf16 %v301, %v297
  %v350 = vpack.c.bf16 %v306, %v302
  %v351 = vpack.c.bf16 %v307, %v303
  %v352 = vpack.c.bf16 %v308, %v304
  %v353 = vpack.c.bf16 %v309, %v305
  %v354 = vpack.c.bf16 %v314, %v310
  %v355 = vpack.c.bf16 %v315, %v311
  %v356 = vpack.c.bf16 %v316, %v312
  %v357 = vpack.c.bf16 %v317, %v313
  %v358 = vpack.c.bf16 %v322, %v318
  %v359 = vpack.c.bf16 %v323, %v319
  %v360 = vpack.c.bf16 %v324, %v320
  %v361 = vpack.c.bf16 %v325, %v321
  %v362 = vpack.c.bf16 %v330, %v326
  %v363 = vpack.c.bf16 %v331, %v327
  %v364 = vpack.c.bf16 %v332, %v328
  %v365 = vpack.c.bf16 %v333, %v329
  %v366 = vmul.f32 %v238, 0.5
  %v367 = vmul.f32 %v239, 0.5
  %v368 = vmul.f32 %v240, 0.5
  %v369 = vtanh.pop %v366
  %v370 = vtanh.pop %v367
  %v371 = vtanh.pop %v368
  %v372 = vmul.f32 %v369, 0.5
  %v373 = vmul.f32 %v370, 0.5
  %v374 = vmul.f32 %v371, 0.5
  %v375 = vadd.f32 %v372, 0.5
  %v376 = vadd.f32 %v373, 0.5
  %v377 = vadd.f32 %v374, 0.5
  %v378 = vtanh.pop %v241
  %v379 = vmul.f32 %v376, 0.0
  %v380 = vmul.f32 %v375, %v378
  %v381 = vadd.f32 %v379, %v380
  %v382 = vtanh.pop %v381
  %v383 = vmul.f32 %v377, %v382
  %384 = vst [vmem:[#allocation2 - $0x3] sm:$0x8] %v383
  %v385 = vpack.c.bf16 %v383, %v383
  %386 = vmatpush.bf16.msra.mxu0 %v362
  %387 = vmatpush.bf16.msra.mxu0 %v358
  %388 = vmatpush.bf16.msra.mxu0 %v354
  %389 = vmatpush.bf16.msra.mxu0 %v350
  %390 = vmatpush.bf16.msra.mxu0 %v346
  %391 = vmatpush.bf16.msra.mxu0 %v342
  %392 = vmatpush.bf16.msra.mxu0 %v338
  %393 = vmatpush.bf16.msra.mxu0 %v334
  %394 = vmatmul.bf16.gmra.mxu0 %v385
  %v395 = vpop.f32.mrf.mxu0
  %v396 = vadd.f32 0.0, %v395
  %v397 = vpop.f32.mrf.mxu0
  %398 = vdwg.mxu0
  %399 = vmatpush.bf16.msra.mxu0 %v363
  %400 = vmatpush.bf16.msra.mxu0 %v359
  %401 = vmatpush.bf16.msra.mxu0 %v355
  %402 = vmatpush.bf16.msra.mxu0 %v351
  %403 = vmatpush.bf16.msra.mxu0 %v347
  %404 = vmatpush.bf16.msra.mxu0 %v343
  %405 = vmatpush.bf16.msra.mxu0 %v339
  %406 = vmatpush.bf16.msra.mxu0 %v335
  %407 = vmatmul.bf16.gmra.mxu0 %v385
  %v408 = vpop.f32.mrf.mxu0
  %v409 = vadd.f32 0.0, %v408
  %v410 = vpop.f32.mrf.mxu0
  %411 = vdwg.mxu0
  %412 = vmatpush.bf16.msra.mxu0 %v364
  %413 = vmatpush.bf16.msra.mxu0 %v360
  %414 = vmatpush.bf16.msra.mxu0 %v356
  %415 = vmatpush.bf16.msra.mxu0 %v352
  %416 = vmatpush.bf16.msra.mxu0 %v348
  %417 = vmatpush.bf16.msra.mxu0 %v344
  %418 = vmatpush.bf16.msra.mxu0 %v340
  %419 = vmatpush.bf16.msra.mxu0 %v336
  %420 = vmatmul.bf16.gmra.mxu0 %v385
  %v421 = vpop.f32.mrf.mxu0
  %v422 = vadd.f32 0.0, %v421
  %v423 = vpop.f32.mrf.mxu0
  %424 = vdwg.mxu0
  %425 = vmatpush.bf16.msra.mxu0 %v365
  %426 = vmatpush.bf16.msra.mxu0 %v361
  %427 = vmatpush.bf16.msra.mxu0 %v357
  %428 = vmatpush.bf16.msra.mxu0 %v353
  %429 = vmatpush.bf16.msra.mxu0 %v349
  %430 = vmatpush.bf16.msra.mxu0 %v345
  %431 = vmatpush.bf16.msra.mxu0 %v341
  %432 = vmatpush.bf16.msra.mxu0 %v337
  %433 = vmatmul.bf16.gmra.mxu0 %v385
  %v434 = vpop.f32.mrf.mxu0
  %v435 = vadd.f32 0.0, %v434
  %v436 = vpop.f32.mrf.mxu0
  %437 = vdwg.mxu0
  %v438 = vadd.f32 %v242, %v396
  %v439 = vadd.f32 %v243, %v409
  %v440 = vadd.f32 %v244, %v422
  %v441 = vadd.f32 %v245, %v435
  %v442 = vmul.f32 %v438, 0.5
  %v443 = vmul.f32 %v439, 0.5
  %v444 = vmul.f32 %v440, 0.5
  %v445 = vtanh.pop %v442
  %v446 = vtanh.pop %v443
  %v447 = vtanh.pop %v444
  %v448 = vmul.f32 %v445, 0.5
  %v449 = vmul.f32 %v446, 0.5
  %v450 = vmul.f32 %v447, 0.5
  %v451 = vadd.f32 %v448, 0.5
  %v452 = vadd.f32 %v449, 0.5
  %v453 = vadd.f32 %v450, 0.5
  %v454 = vtanh.pop %v441
  %v455 = vmul.f32 %v452, %v381
  %v456 = vmul.f32 %v451, %v454
  %v457 = vadd.f32 %v455, %v456
  %v458 = vtanh.pop %v457
  %v459 = vmul.f32 %v453, %v458
  %460 = vst [vmem:[#allocation2 - $0x2] sm:$0x8] %v459
  %v461 = vpack.c.bf16 %v459, %v459
  %462 = vmatpush.bf16.msra.mxu0 %v362
  %463 = vmatpush.bf16.msra.mxu0 %v358
  %464 = vmatpush.bf16.msra.mxu0 %v354
  %465 = vmatpush.bf16.msra.mxu0 %v350
  %466 = vmatpush.bf16.msra.mxu0 %v346
  %467 = vmatpush.bf16.msra.mxu0 %v342
  %468 = vmatpush.bf16.msra.mxu0 %v338
  %469 = vmatpush.bf16.msra.mxu0 %v334
  %470 = vmatmul.bf16.gmra.mxu0 %v461
  %v471 = vpop.f32.mrf.mxu0
  %v472 = vadd.f32 0.0, %v471
  %v473 = vpop.f32.mrf.mxu0
  %474 = vdwg.mxu0
  %475 = vmatpush.bf16.msra.mxu0 %v363
  %476 = vmatpush.bf16.msra.mxu0 %v359
  %477 = vmatpush.bf16.msra.mxu0 %v355
  %478 = vmatpush.bf16.msra.mxu0 %v351
  %479 = vmatpush.bf16.msra.mxu0 %v347
  %480 = vmatpush.bf16.msra.mxu0 %v343
  %481 = vmatpush.bf16.msra.mxu0 %v339
  %482 = vmatpush.bf16.msra.mxu0 %v335
  %483 = vmatmul.bf16.gmra.mxu0 %v461
  %v484 = vpop.f32.mrf.mxu0
  %v485 = vadd.f32 0.0, %v484
  %v486 = vpop.f32.mrf.mxu0
  %487 = vdwg.mxu0
  %488 = vmatpush.bf16.msra.mxu0 %v364
  %489 = vmatpush.bf16.msra.mxu0 %v360
  %490 = vmatpush.bf16.msra.mxu0 %v356
  %491 = vmatpush.bf16.msra.mxu0 %v352
  %492 = vmatpush.bf16.msra.mxu0 %v348
  %493 = vmatpush.bf16.msra.mxu0 %v344
  %494 = vmatpush.bf16.msra.mxu0 %v340
  %495 = vmatpush.bf16.msra.mxu0 %v336
  %496 = vmatmul.bf16.gmra.mxu0 %v461
  %v497 = vpop.f32.mrf.mxu0
  %v498 = vadd.f32 0.0, %v497
  %v499 = vpop.f32.mrf.mxu0
  %500 = vdwg.mxu0
  %501 = vmatpush.bf16.msra.mxu0 %v365
  %502 = vmatpush.bf16.msra.mxu0 %v361
  %503 = vmatpush.bf16.msra.mxu0 %v357
  %504 = vmatpush.bf16.msra.mxu0 %v353
  %505 = vmatpush.bf16.msra.mxu0 %v349
  %506 = vmatpush.bf16.msra.mxu0 %v345
  %507 = vmatpush.bf16.msra.mxu0 %v341
  %508 = vmatpush.bf16.msra.mxu0 %v337
  %509 = vmatmul.bf16.gmra.mxu0 %v461
  %v510 = vpop.f32.mrf.mxu0
  %v511 = vadd.f32 0.0, %v510
  %v512 = vpop.f32.mrf.mxu0
  %513 = vdwg.mxu0
  %v514 = vadd.f32 %v246, %v472
  %v515 = vadd.f32 %v247, %v485
  %v516 = vadd.f32 %v248, %v498
  %v517 = vadd.f32 %v249, %v511
  %v518 = vmul.f32 %v514, 0.5
  %v519 = vmul.f32 %v515, 0.5
  %v520 = vmul.f32 %v516, 0.5
  %v521 = vtanh.pop %v518
  %v522 = vtanh.pop %v519
  %v523 = vtanh.pop %v520
  %v524 = vmul.f32 %v521, 0.5
  %v525 = vmul.f32 %v522, 0.5
  %v526 = vmul.f32 %v523, 0.5
  %v527 = vadd.f32 %v524, 0.5
  %v528 = vadd.f32 %v525, 0.5
  %v529 = vadd.f32 %v526, 0.5
  %v530 = vtanh.pop %v517
  %v531 = vmul.f32 %v528, %v457
  %v532 = vmul.f32 %v527, %v530
  %v533 = vadd.f32 %v531, %v532
  %v534 = vtanh.pop %v533
  %v535 = vmul.f32 %v529, %v534
  %536 = vst [vmem:[#allocation2 - $0x1] sm:$0x8] %v535
  %v537 = vpack.c.bf16 %v535, %v535
  %538 = vmatpush.bf16.msra.mxu0 %v362
  %539 = vmatpush.bf16.msra.mxu0 %v358
  %540 = vmatpush.bf16.msra.mxu0 %v354
  %541 = vmatpush.bf16.msra.mxu0 %v350
  %542 = vmatpush.bf16.msra.mxu0 %v346
  %543 = vmatpush.bf16.msra.mxu0 %v342
  %544 = vmatpush.bf16.msra.mxu0 %v338
  %545 = vmatpush.bf16.msra.mxu0 %v334
  %546 = vmatmul.bf16.gmra.mxu0 %v537
  %v547 = vpop.f32.mrf.mxu0
  %v548 = vadd.f32 0.0, %v547
  %v549 = vpop.f32.mrf.mxu0
  %550 = vdwg.mxu0
  %551 = vmatpush.bf16.msra.mxu0 %v363
  %552 = vmatpush.bf16.msra.mxu0 %v359
  %553 = vmatpush.bf16.msra.mxu0 %v355
  %554 = vmatpush.bf16.msra.mxu0 %v351
  %555 = vmatpush.bf16.msra.mxu0 %v347
  %556 = vmatpush.bf16.msra.mxu0 %v343
  %557 = vmatpush.bf16.msra.mxu0 %v339
  %558 = vmatpush.bf16.msra.mxu0 %v335
  %559 = vmatmul.bf16.gmra.mxu0 %v537
  %v560 = vpop.f32.mrf.mxu0
  %v561 = vadd.f32 0.0, %v560
  %v562 = vpop.f32.mrf.mxu0
  %563 = vdwg.mxu0
  %564 = vmatpush.bf16.msra.mxu0 %v364
  %565 = vmatpush.bf16.msra.mxu0 %v360
  %566 = vmatpush.bf16.msra.mxu0 %v356
  %567 = vmatpush.bf16.msra.mxu0 %v352
  %568 = vmatpush.bf16.msra.mxu0 %v348
  %569 = vmatpush.bf16.msra.mxu0 %v344
  %570 = vmatpush.bf16.msra.mxu0 %v340
  %571 = vmatpush.bf16.msra.mxu0 %v336
  %572 = vmatmul.bf16.gmra.mxu0 %v537
  %v573 = vpop.f32.mrf.mxu0
  %v574 = vadd.f32 0.0, %v573
  %v575 = vpop.f32.mrf.mxu0
  %576 = vdwg.mxu0
  %577 = vmatpush.bf16.msra.mxu0 %v365
  %578 = vmatpush.bf16.msra.mxu0 %v361
  %579 = vmatpush.bf16.msra.mxu0 %v357
  %580 = vmatpush.bf16.msra.mxu0 %v353
  %581 = vmatpush.bf16.msra.mxu0 %v349
  %582 = vmatpush.bf16.msra.mxu0 %v345
  %583 = vmatpush.bf16.msra.mxu0 %v341
  %584 = vmatpush.bf16.msra.mxu0 %v337
  %585 = vmatmul.bf16.gmra.mxu0 %v537
  %v586 = vpop.f32.mrf.mxu0
  %v587 = vadd.f32 0.0, %v586
  %v588 = vpop.f32.mrf.mxu0
  %589 = vdwg.mxu0
  %v590 = vadd.f32 %v250, %v548
  %v591 = vadd.f32 %v251, %v561
  %v592 = vadd.f32 %v252, %v574
  %v593 = vadd.f32 %v253, %v587
  %v594 = vmul.f32 %v590, 0.5
  %v595 = vmul.f32 %v591, 0.5
  %v596 = vmul.f32 %v592, 0.5
  %v597 = vtanh.pop %v594
  %v598 = vtanh.pop %v595
  %v599 = vtanh.pop %v596
  %v600 = vmul.f32 %v597, 0.5
  %v601 = vmul.f32 %v598, 0.5
  %v602 = vmul.f32 %v599, 0.5
  %v603 = vadd.f32 %v600, 0.5
  %v604 = vadd.f32 %v601, 0.5
  %v605 = vadd.f32 %v602, 0.5
  %v606 = vtanh.pop %v593
  %v607 = vmul.f32 %v604, %v533
  %v608 = vmul.f32 %v603, %v606
  %v609 = vadd.f32 %v607, %v608
  %v610 = vtanh.pop %v609
  %v611 = vmul.f32 %v605, %v610
  %612 = vst [vmem:[#allocation2] sm:$0x8] %v611
  %v613 = vpack.c.bf16 %v611, %v611
  %614 = vmatpush.bf16.msra.mxu0 %v362
  %615 = vmatpush.bf16.msra.mxu0 %v358
  %616 = vmatpush.bf16.msra.mxu0 %v354
  %617 = vmatpush.bf16.msra.mxu0 %v350
  %618 = vmatpush.bf16.msra.mxu0 %v346
  %619 = vmatpush.bf16.msra.mxu0 %v342
  %620 = vmatpush.bf16.msra.mxu0 %v338
  %621 = vmatpush.bf16.msra.mxu0 %v334
  %622 = vmatmul.bf16.gmra.mxu0 %v613
  %v623 = vpop.f32.mrf.mxu0
  %v624 = vadd.f32 0.0, %v623
  %v625 = vpop.f32.mrf.mxu0
  %626 = vdwg.mxu0
  %627 = vmatpush.bf16.msra.mxu0 %v363
  %628 = vmatpush.bf16.msra.mxu0 %v359
  %629 = vmatpush.bf16.msra.mxu0 %v355
  %630 = vmatpush.bf16.msra.mxu0 %v351
  %631 = vmatpush.bf16.msra.mxu0 %v347
  %632 = vmatpush.bf16.msra.mxu0 %v343
  %633 = vmatpush.bf16.msra.mxu0 %v339
  %634 = vmatpush.bf16.msra.mxu0 %v335
  %635 = vmatmul.bf16.gmra.mxu0 %v613
  %v636 = vpop.f32.mrf.mxu0
  %v637 = vadd.f32 0.0, %v636
  %v638 = vpop.f32.mrf.mxu0
  %639 = vdwg.mxu0
  %640 = vmatpush.bf16.msra.mxu0 %v364
  %641 = vmatpush.bf16.msra.mxu0 %v360
  %642 = vmatpush.bf16.msra.mxu0 %v356
  %643 = vmatpush.bf16.msra.mxu0 %v352
  %644 = vmatpush.bf16.msra.mxu0 %v348
  %645 = vmatpush.bf16.msra.mxu0 %v344
  %646 = vmatpush.bf16.msra.mxu0 %v340
  %647 = vmatpush.bf16.msra.mxu0 %v336
  %648 = vmatmul.bf16.gmra.mxu0 %v613
  %v649 = vpop.f32.mrf.mxu0
  %v650 = vadd.f32 0.0, %v649
  %v651 = vpop.f32.mrf.mxu0
  %652 = vdwg.mxu0
  %653 = vmatpush.bf16.msra.mxu0 %v365
  %654 = vmatpush.bf16.msra.mxu0 %v361
  %655 = vmatpush.bf16.msra.mxu0 %v357
  %656 = vmatpush.bf16.msra.mxu0 %v353
  %657 = vmatpush.bf16.msra.mxu0 %v349
  %658 = vmatpush.bf16.msra.mxu0 %v345
  %659 = vmatpush.bf16.msra.mxu0 %v341
  %660 = vmatpush.bf16.msra.mxu0 %v337
  %661 = vmatmul.bf16.gmra.mxu0 %v613
  %v662 = vpop.f32.mrf.mxu0
  %v663 = vadd.f32 0.0, %v662
  %v664 = vpop.f32.mrf.mxu0
  %665 = vdwg.mxu0
  %v666 = vadd.f32 %v254, %v624
  %v667 = vadd.f32 %v255, %v637
  %v668 = vadd.f32 %v256, %v650
  %v669 = vadd.f32 %v257, %v663
  %v670 = vmul.f32 %v666, 0.5
  %v671 = vmul.f32 %v667, 0.5
  %v672 = vmul.f32 %v668, 0.5
  %v673 = vtanh.pop %v670
  %v674 = vtanh.pop %v671
  %v675 = vtanh.pop %v672
  %v676 = vmul.f32 %v673, 0.5
  %v677 = vmul.f32 %v674, 0.5
  %v678 = vmul.f32 %v675, 0.5
  %v679 = vadd.f32 %v676, 0.5
  %v680 = vadd.f32 %v677, 0.5
  %v681 = vadd.f32 %v678, 0.5
  %v682 = vtanh.pop %v669
  %v683 = vmul.f32 %v680, %v609
  %v684 = vmul.f32 %v679, %v682
  %v685 = vadd.f32 %v683, %v684
  %v686 = vtanh.pop %v685
  %v687 = vmul.f32 %v681, %v686
  %688 = vst [vmem:[#allocation2 + $0x1] sm:$0x8] %v687
  %v689 = vpack.c.bf16 %v687, %v687
  %690 = vmatpush.bf16.msra.mxu0 %v362
  %691 = vmatpush.bf16.msra.mxu0 %v358
  %692 = vmatpush.bf16.msra.mxu0 %v354
  %693 = vmatpush.bf16.msra.mxu0 %v350
  %694 = vmatpush.bf16.msra.mxu0 %v346
  %695 = vmatpush.bf16.msra.mxu0 %v342
  %696 = vmatpush.bf16.msra.mxu0 %v338
  %697 = vmatpush.bf16.msra.mxu0 %v334
  %698 = vmatmul.bf16.gmra.mxu0 %v689
  %v699 = vpop.f32.mrf.mxu0
  %v700 = vadd.f32 0.0, %v699
  %v701 = vpop.f32.mrf.mxu0
  %702 = vdwg.mxu0
  %703 = vmatpush.bf16.msra.mxu0 %v363
  %704 = vmatpush.bf16.msra.mxu0 %v359
  %705 = vmatpush.bf16.msra.mxu0 %v355
  %706 = vmatpush.bf16.msra.mxu0 %v351
  %707 = vmatpush.bf16.msra.mxu0 %v347
  %708 = vmatpush.bf16.msra.mxu0 %v343
  %709 = vmatpush.bf16.msra.mxu0 %v339
  %710 = vmatpush.bf16.msra.mxu0 %v335
  %711 = vmatmul.bf16.gmra.mxu0 %v689
  %v712 = vpop.f32.mrf.mxu0
  %v713 = vadd.f32 0.0, %v712
  %v714 = vpop.f32.mrf.mxu0
  %715 = vdwg.mxu0
  %716 = vmatpush.bf16.msra.mxu0 %v364
  %717 = vmatpush.bf16.msra.mxu0 %v360
  %718 = vmatpush.bf16.msra.mxu0 %v356
  %719 = vmatpush.bf16.msra.mxu0 %v352
  %720 = vmatpush.bf16.msra.mxu0 %v348
  %721 = vmatpush.bf16.msra.mxu0 %v344
  %722 = vmatpush.bf16.msra.mxu0 %v340
  %723 = vmatpush.bf16.msra.mxu0 %v336
  %724 = vmatmul.bf16.gmra.mxu0 %v689
  %v725 = vpop.f32.mrf.mxu0
  %v726 = vadd.f32 0.0, %v725
  %v727 = vpop.f32.mrf.mxu0
  %728 = vdwg.mxu0
  %729 = vmatpush.bf16.msra.mxu0 %v365
  %730 = vmatpush.bf16.msra.mxu0 %v361
  %731 = vmatpush.bf16.msra.mxu0 %v357
  %732 = vmatpush.bf16.msra.mxu0 %v353
  %733 = vmatpush.bf16.msra.mxu0 %v349
  %734 = vmatpush.bf16.msra.mxu0 %v345
  %735 = vmatpush.bf16.msra.mxu0 %v341
  %736 = vmatpush.bf16.msra.mxu0 %v337
  %737 = vmatmul.bf16.gmra.mxu0 %v689
  %v738 = vpop.f32.mrf.mxu0
  %v739 = vadd.f32 0.0, %v738
  %v740 = vpop.f32.mrf.mxu0
  %741 = vdwg.mxu0
  %v742 = vadd.f32 %v258, %v700
  %v743 = vadd.f32 %v259, %v713
  %v744 = vadd.f32 %v260, %v726
  %v745 = vadd.f32 %v261, %v739
  %v746 = vmul.f32 %v742, 0.5
  %v747 = vmul.f32 %v743, 0.5
  %v748 = vmul.f32 %v744, 0.5
  %v749 = vtanh.pop %v746
  %v750 = vtanh.pop %v747
  %v751 = vtanh.pop %v748
  %v752 = vmul.f32 %v749, 0.5
  %v753 = vmul.f32 %v750, 0.5
  %v754 = vmul.f32 %v751, 0.5
  %v755 = vadd.f32 %v752, 0.5
  %v756 = vadd.f32 %v753, 0.5
  %v757 = vadd.f32 %v754, 0.5
  %v758 = vtanh.pop %v745
  %v759 = vmul.f32 %v756, %v685
  %v760 = vmul.f32 %v755, %v758
  %v761 = vadd.f32 %v759, %v760
  %v762 = vtanh.pop %v761
  %v763 = vmul.f32 %v757, %v762
  %764 = vst [vmem:[#allocation2 + $0x2] sm:$0x8] %v763
  %v765 = vpack.c.bf16 %v763, %v763
  %766 = vmatpush.bf16.msra.mxu0 %v362
  %767 = vmatpush.bf16.msra.mxu0 %v358
  %768 = vmatpush.bf16.msra.mxu0 %v354
  %769 = vmatpush.bf16.msra.mxu0 %v350
  %770 = vmatpush.bf16.msra.mxu0 %v346
  %771 = vmatpush.bf16.msra.mxu0 %v342
  %772 = vmatpush.bf16.msra.mxu0 %v338
  %773 = vmatpush.bf16.msra.mxu0 %v334
  %774 = vmatmul.bf16.gmra.mxu0 %v765
  %v775 = vpop.f32.mrf.mxu0
  %v776 = vadd.f32 0.0, %v775
  %v777 = vpop.f32.mrf.mxu0
  %778 = vdwg.mxu0
  %779 = vmatpush.bf16.msra.mxu0 %v363
  %780 = vmatpush.bf16.msra.mxu0 %v359
  %781 = vmatpush.bf16.msra.mxu0 %v355
  %782 = vmatpush.bf16.msra.mxu0 %v351
  %783 = vmatpush.bf16.msra.mxu0 %v347
  %784 = vmatpush.bf16.msra.mxu0 %v343
  %785 = vmatpush.bf16.msra.mxu0 %v339
  %786 = vmatpush.bf16.msra.mxu0 %v335
  %787 = vmatmul.bf16.gmra.mxu0 %v765
  %v788 = vpop.f32.mrf.mxu0
  %v789 = vadd.f32 0.0, %v788
  %v790 = vpop.f32.mrf.mxu0
  %791 = vdwg.mxu0
  %792 = vmatpush.bf16.msra.mxu0 %v364
  %793 = vmatpush.bf16.msra.mxu0 %v360
  %794 = vmatpush.bf16.msra.mxu0 %v356
  %795 = vmatpush.bf16.msra.mxu0 %v352
  %796 = vmatpush.bf16.msra.mxu0 %v348
  %797 = vmatpush.bf16.msra.mxu0 %v344
  %798 = vmatpush.bf16.msra.mxu0 %v340
  %799 = vmatpush.bf16.msra.mxu0 %v336
  %800 = vmatmul.bf16.gmra.mxu0 %v765
  %v801 = vpop.f32.mrf.mxu0
  %v802 = vadd.f32 0.0, %v801
  %v803 = vpop.f32.mrf.mxu0
  %804 = vdwg.mxu0
  %805 = vmatpush.bf16.msra.mxu0 %v365
  %806 = vmatpush.bf16.msra.mxu0 %v361
  %807 = vmatpush.bf16.msra.mxu0 %v357
  %808 = vmatpush.bf16.msra.mxu0 %v353
  %809 = vmatpush.bf16.msra.mxu0 %v349
  %810 = vmatpush.bf16.msra.mxu0 %v345
  %811 = vmatpush.bf16.msra.mxu0 %v341
  %812 = vmatpush.bf16.msra.mxu0 %v337
  %813 = vmatmul.bf16.gmra.mxu0 %v765
  %v814 = vpop.f32.mrf.mxu0
  %v815 = vadd.f32 0.0, %v814
  %v816 = vpop.f32.mrf.mxu0
  %817 = vdwg.mxu0
  %v818 = vadd.f32 %v262, %v776
  %v819 = vadd.f32 %v263, %v789
  %v820 = vadd.f32 %v264, %v802
  %v821 = vadd.f32 %v265, %v815
  %v822 = vmul.f32 %v818, 0.5
  %v823 = vmul.f32 %v819, 0.5
  %v824 = vmul.f32 %v820, 0.5
  %v825 = vtanh.pop %v822
  %v826 = vtanh.pop %v823
  %v827 = vtanh.pop %v824
  %v828 = vmul.f32 %v825, 0.5
  %v829 = vmul.f32 %v826, 0.5
  %v830 = vmul.f32 %v827, 0.5
  %v831 = vadd.f32 %v828, 0.5
  %v832 = vadd.f32 %v829, 0.5
  %v833 = vadd.f32 %v830, 0.5
  %v834 = vtanh.pop %v821
  %v835 = vmul.f32 %v832, %v761
  %v836 = vmul.f32 %v831, %v834
  %v837 = vadd.f32 %v835, %v836
  %v838 = vtanh.pop %v837
  %v839 = vmul.f32 %v833, %v838
  %840 = vst [vmem:[#allocation2 + $0x3] sm:$0x8] %v839
  %v841 = vpack.c.bf16 %v839, %v839
  %842 = vmatpush.bf16.msra.mxu0 %v362
  %843 = vmatpush.bf16.msra.mxu0 %v358
  %844 = vmatpush.bf16.msra.mxu0 %v354
  %845 = vmatpush.bf16.msra.mxu0 %v350
  %846 = vmatpush.bf16.msra.mxu0 %v346
  %847 = vmatpush.bf16.msra.mxu0 %v342
  %848 = vmatpush.bf16.msra.mxu0 %v338
  %849 = vmatpush.bf16.msra.mxu0 %v334
  %850 = vmatmul.bf16.gmra.mxu0 %v841
  %v851 = vpop.f32.mrf.mxu0
  %v852 = vadd.f32 0.0, %v851
  %v853 = vpop.f32.mrf.mxu0
  %854 = vdwg.mxu0
  %855 = vmatpush.bf16.msra.mxu0 %v363
  %856 = vmatpush.bf16.msra.mxu0 %v359
  %857 = vmatpush.bf16.msra.mxu0 %v355
  %858 = vmatpush.bf16.msra.mxu0 %v351
  %859 = vmatpush.bf16.msra.mxu0 %v347
  %860 = vmatpush.bf16.msra.mxu0 %v343
  %861 = vmatpush.bf16.msra.mxu0 %v339
  %862 = vmatpush.bf16.msra.mxu0 %v335
  %863 = vmatmul.bf16.gmra.mxu0 %v841
  %v864 = vpop.f32.mrf.mxu0
  %v865 = vadd.f32 0.0, %v864
  %v866 = vpop.f32.mrf.mxu0
  %867 = vdwg.mxu0
  %868 = vmatpush.bf16.msra.mxu0 %v364
  %869 = vmatpush.bf16.msra.mxu0 %v360
  %870 = vmatpush.bf16.msra.mxu0 %v356
  %871 = vmatpush.bf16.msra.mxu0 %v352
  %872 = vmatpush.bf16.msra.mxu0 %v348
  %873 = vmatpush.bf16.msra.mxu0 %v344
  %874 = vmatpush.bf16.msra.mxu0 %v340
  %875 = vmatpush.bf16.msra.mxu0 %v336
  %876 = vmatmul.bf16.gmra.mxu0 %v841
  %v877 = vpop.f32.mrf.mxu0
  %v878 = vadd.f32 0.0, %v877
  %v879 = vpop.f32.mrf.mxu0
  %880 = vdwg.mxu0
  %881 = vmatpush.bf16.msra.mxu0 %v365
  %882 = vmatpush.bf16.msra.mxu0 %v361
  %883 = vmatpush.bf16.msra.mxu0 %v357
  %884 = vmatpush.bf16.msra.mxu0 %v353
  %885 = vmatpush.bf16.msra.mxu0 %v349
  %886 = vmatpush.bf16.msra.mxu0 %v345
  %887 = vmatpush.bf16.msra.mxu0 %v341
  %888 = vmatpush.bf16.msra.mxu0 %v337
  %889 = vmatmul.bf16.gmra.mxu0 %v841
  %v890 = vpop.f32.mrf.mxu0
  %v891 = vadd.f32 0.0, %v890
  %v892 = vpop.f32.mrf.mxu0
  %893 = vdwg.mxu0
  %v894 = vadd.f32 %v266, %v852
  %v895 = vadd.f32 %v267, %v865
  %v896 = vadd.f32 %v268, %v878
  %v897 = vadd.f32 %v269, %v891
  %v898 = vmul.f32 %v894, 0.5
  %v899 = vmul.f32 %v895, 0.5
  %v900 = vmul.f32 %v896, 0.5
  %v901 = vtanh.pop %v898
  %v902 = vtanh.pop %v899
  %v903 = vtanh.pop %v900
  %v904 = vmul.f32 %v901, 0.5
  %v905 = vmul.f32 %v902, 0.5
  %v906 = vmul.f32 %v903, 0.5
  %v907 = vadd.f32 %v904, 0.5
  %v908 = vadd.f32 %v905, 0.5
  %v909 = vadd.f32 %v906, 0.5
  %v910 = vtanh.pop %v897
  %v911 = vmul.f32 %v908, %v837
  %v912 = vmul.f32 %v907, %v910
  %v913 = vadd.f32 %v911, %v912
  %v914 = vtanh.pop %v913
  %v915 = vmul.f32 %v909, %v914
  %916 = vst [vmem:[#allocation2 + $0x4] sm:$0x8] %v915
  %v917 = vld [vmem:[#allocation2] sm:$0xff]
  %v918 = vld [vmem:[%s4] sm:$0x1]
  %v920 = vperm.slane %v918, 0
  %v922 = vmul.f32 %v917, %v920
  %923 = vadd.xlane.f32.xlu0 %v922
  %v924 = vpop.xlane.xlu0 %923
  %v925 = vld [vmem:[#allocation3] sm:$0x1]
  %v927 = vperm.slane %v925, 0
  %v929 = vadd.f32 %v924, %v927
  %vm930 = vcmask 7168
  %931 = vst.msk [vmem:[%s6] sm:$0xff] %vm930, %v929
  // Predicated region
  $region26: #{lstm_forward.1} parent=0 // pred_check
    _
  $region27: #{lstm_forward.1} parent=0 // pred_check_branch
    %933 = sbr.rel (0) target = $region29
  $region28: #{lstm_forward.1} parent=0 // pred_region
    _
  $region29: #{lstm_forward.1} parent=0 // pred_fallthru
    _
  // Predicated region
  $region30: #{lstm_forward.1} parent=0 // pred_check
    _
  $region31: #{lstm_forward.1} parent=0 // pred_check_branch
    %935 = sbr.rel (0) target = $region33
  $region32: #{lstm_forward.1} parent=0 // pred_region
    _
  $region33: #{lstm_forward.1} parent=0 // pred_fallthru
    _

</llo_original>
